<compile_context>
chip_gen: v6e
topology: v6e:2x2x1
jax: 0.10.0
libtpu: 0.0.40
codegen_flags: <defaults>
</compile_context>

<pallas_src>
import jax
import jax.numpy as jnp
from jax.experimental import pallas as pl
from jax.experimental.pallas import tpu as pltpu


def _round_up(x: int, m: int) -> int:
    return ((x + m - 1) // m) * m


def _pick_tile(dim: int, target: int, align: int):
    """Balanced tile (<= round_up(target, align)) minimizing padding.

    Returns (tile, padded_dim) with padded_dim = n_tiles * tile >= dim.
    """
    n_tiles = -(-dim // target)
    tile = _round_up(-(-dim // n_tiles), align)
    return tile, n_tiles * tile


# ---------------------------------------------------------------------------
# Small path: whole problem in a single VMEM block, no grid, no padding.
# ---------------------------------------------------------------------------
def _linear_add_small_kernel(x1_ref, wt_ref, b_ref, x2_ref, o_ref):
    # y = x1 @ W^T + b + x2, with W already transposed to (Din, Dout).
    y = jax.lax.dot_general(
        x1_ref[...], wt_ref[...],
        dimension_numbers=(((1,), (0,)), ((), ())),
        preferred_element_type=jnp.float32,
    )
    o_ref[...] = y + b_ref[...].astype(jnp.float32) + x2_ref[...].astype(jnp.float32)


def _linear_add_small(x1_2d, x2_2d, w_t, b_2d):
    M, _ = x1_2d.shape
    Dout = w_t.shape[1]
    vmem = pl.BlockSpec(memory_space=pltpu.MemorySpace.VMEM)
    return pl.pallas_call(
        _linear_add_small_kernel,
        out_shape=jax.ShapeDtypeStruct((M, Dout), jnp.float32),
        in_specs=[vmem, vmem, vmem, vmem],
        out_specs=vmem,
    )(x1_2d, w_t, b_2d, x2_2d)


# ---------------------------------------------------------------------------
# Tiled path: pipelined Linear+add, accumulating directly into the (f32)
# output block which stays resident across the K (reduction) grid axis.
# ---------------------------------------------------------------------------
def _linear_add_tiled_kernel(x1_ref, wt_ref, b_ref, x2_ref, o_ref):
    k = pl.program_id(2)

    @pl.when(k == 0)
    def _init():
        o_ref[...] = jnp.zeros_like(o_ref)

    # (tm, tk) @ (tk, tn) -> (tm, tn), f32 accumulation on the MXU.
    o_ref[...] += jax.lax.dot_general(
        x1_ref[...], wt_ref[...],
        dimension_numbers=(((1,), (0,)), ((), ())),
        preferred_element_type=jnp.float32,
    )

    @pl.when(k == pl.num_programs(2) - 1)
    def _finalize():
        # Bias / x2 epilogue once per output tile (not per K step).
        o_ref[...] += b_ref[...].astype(jnp.float32) + x2_ref[...].astype(jnp.float32)


def _linear_add_tiled(x1_2d, x2_2d, w_t, b_2d, tm, tn, tk):
    M, Din = x1_2d.shape
    Dout = w_t.shape[1]

    # Balanced tiles + padded extents (tm aligned to 8, tn/tk to 128 lanes;
    # at the 512-class targets large dims get 512, a 256-multiple, filling the
    # v6e/v7x 256x256 MXU).
    tm, Mp = _pick_tile(M, tm, 8)
    tn, Np = _pick_tile(Dout, tn, 128)
    tk, Kp = _pick_tile(Din, tk, 128)

    if (Mp, Kp) != (M, Din):
        x1_2d = jnp.pad(x1_2d, ((0, Mp - M), (0, Kp - Din)))
    if (Kp, Np) != (Din, Dout):
        w_t = jnp.pad(w_t, ((0, Kp - Din), (0, Np - Dout)))
    if Np != Dout:
        b_2d = jnp.pad(b_2d, ((0, 0), (0, Np - Dout)))
    if (Mp, Np) != (M, Dout):
        x2_2d = jnp.pad(x2_2d, ((0, Mp - M), (0, Np - Dout)))

    # Double-buffered VMEM footprint estimate; request explicit headroom so the
    # v5e 16 MiB scoped default does not force single-buffering, while staying
    # well inside v7x's 64 MiB physical VMEM.
    isz = x1_2d.dtype.itemsize
    est = 2 * (tm * tk * isz + tk * tn * isz + tm * tn * isz + tn * isz
               + tm * tn * 4)
    vmem_limit = int(min(max(2 * est, 32 * 1024 * 1024), 96 * 1024 * 1024))

    grid = (Mp // tm, Np // tn, Kp // tk)
    out_p = pl.pallas_call(
        _linear_add_tiled_kernel,
        out_shape=jax.ShapeDtypeStruct((Mp, Np), jnp.float32),
        grid=grid,
        in_specs=[
            pl.BlockSpec((tm, tk), lambda i, j, k: (i, k)),   # x1
            pl.BlockSpec((tk, tn), lambda i, j, k: (k, j)),   # W^T (Din, Dout)
            pl.BlockSpec((1, tn), lambda i, j, k: (0, j)),    # bias row
            pl.BlockSpec((tm, tn), lambda i, j, k: (i, j)),   # x2
        ],
        out_specs=pl.BlockSpec((tm, tn), lambda i, j, k: (i, j)),
        compiler_params=pltpu.CompilerParams(
            dimension_semantics=("parallel", "parallel", "arbitrary"),
            vmem_limit_bytes=vmem_limit),
    )(x1_2d, w_t, b_2d, x2_2d)

    if (Mp, Np) != (M, Dout):
        out_p = out_p[:M, :Dout]
    return out_p


# ---------------------------------------------------------------------------
# Public wrapper: forward of the PyTorch Model.
# ---------------------------------------------------------------------------
def linear_add(x1, x2, weight, bias, *, tm=512, tn=512, tk=512):
    """x1: (B, S, Din), x2: (B, S, Dout), weight: (Dout, Din), bias: (Dout,)."""
    B, S, Din = x1.shape
    Dout = weight.shape[0]
    M = B * S
    x1_2d = x1.reshape(M, Din)
    x2_2d = x2.reshape(M, Dout)
    w_t = weight.T                    # one-time transpose -> (Din, Dout)
    b_2d = bias.reshape(1, Dout)

    if M <= 512 and Din <= 512 and Dout <= 512:
        # Fits in a single tile: one un-gridded VMEM block, no padding needed.
        out_2d = _linear_add_small(x1_2d, x2_2d, w_t, b_2d)
    else:
        # Anything larger goes through the pipelined tiled path (padded up to
        # tile multiples in the wrapper; zero padding is exact for matmul/add).
        out_2d = _linear_add_tiled(x1_2d, x2_2d, w_t, b_2d, tm, tn, tk)

    # TODO(synk): optional bf16 input/weight cast (f32 accumulation) for ~3x
    # MXU throughput when reduced precision is acceptable.
    return out_2d.astype(x1.dtype).reshape(B, S, Dout)


if __name__ == "__main__":
    # --- shapes from the PyTorch spec: d1 = 10, x1/x2 of shape (1, 1, 10) ---
    d1 = 10
    d2 = 10

    key = jax.random.PRNGKey(0)
    k_x1, k_x2, k_w, k_b, k_big = jax.random.split(key, 5)

    x1 = jax.random.normal(k_x1, (1, 1, d1), dtype=jnp.float32)
    x2 = jax.random.normal(k_x2, (1, 1, d2), dtype=jnp.float32)

    # PyTorch-style Linear init: uniform(-1/sqrt(dim1), 1/sqrt(dim1)).
    bound = 1.0 / (d1 ** 0.5)
    weight = jax.random.uniform(k_w, (d2, d1), minval=-bound, maxval=bound,
                                dtype=jnp.float32)
    bias = jax.random.uniform(k_b, (d2,), minval=-bound, maxval=bound,
                              dtype=jnp.float32)

    out = linear_add(x1, x2, weight, bias)
    jax.block_until_ready(out)

    ref = jnp.einsum("bsk,nk->bsn", x1, weight,
                     precision=jax.lax.Precision.HIGHEST) + bias + x2
    assert out.shape == (1, 1, d2)
    max_err = float(jnp.max(jnp.abs(out - ref)))
    assert max_err < 1e-2, max_err

    # --- sanity-check the tiled path with NON-tile-aligned dims -------------
    # (exercises wrapper padding, the K accumulation loop and output slicing)
    kb1, kb2, kb3, kb4 = jax.random.split(k_big, 4)
    Bb, Sb, Dinb, Doutb = 2, 64, 640, 200
    xb1 = jax.random.normal(kb1, (Bb, Sb, Dinb), dtype=jnp.float32)
    xb2 = jax.random.normal(kb2, (Bb, Sb, Doutb), dtype=jnp.float32)
    wb = jax.random.normal(kb3, (Doutb, Dinb), dtype=jnp.float32) * 0.05
    bb = jax.random.normal(kb4, (Doutb,), dtype=jnp.float32)

    out_big = linear_add(xb1, xb2, wb, bb)
    jax.block_until_ready(out_big)
    ref_big = jnp.einsum("bsk,nk->bsn", xb1, wb,
                         precision=jax.lax.Precision.HIGHEST) + bb + xb2
    rel_err = jnp.max(jnp.abs(out_big - ref_big)) / (jnp.max(jnp.abs(ref_big)) + 1e-6)
    assert out_big.shape == (Bb, Sb, Doutb)
    assert rel_err < 1e-2, float(rel_err)

    print("KERNEL_OK")
</pallas_src>

<mosaic_0001>
module attributes {stable_mosaic.version = 11 : i64} {
  func.func @_linear_add_small_kernel(%arg0: memref<1x10xf32, #tpu.memory_space<vmem>>, %arg1: memref<10x10xf32, #tpu.memory_space<vmem>>, %arg2: memref<1x10xf32, #tpu.memory_space<vmem>>, %arg3: memref<1x10xf32, #tpu.memory_space<vmem>>, %arg4: memref<1x10xf32, #tpu.memory_space<vmem>>) attributes {dimension_semantics = [], scalar_prefetch = 0 : i64, scratch_operands = 0 : i64, tpu.core_type = #tpu.core_type<tc>} {
    %c0 = arith.constant 0 : index
    %c0_0 = arith.constant 0 : index
    %0 = vector.load %arg0[%c0, %c0_0] : memref<1x10xf32, #tpu.memory_space<vmem>>, vector<1x10xf32>
    %c0_1 = arith.constant 0 : index
    %c0_2 = arith.constant 0 : index
    %1 = vector.load %arg1[%c0_1, %c0_2] : memref<10x10xf32, #tpu.memory_space<vmem>>, vector<10x10xf32>
    %cst = arith.constant dense<0.000000e+00> : vector<1x10xf32>
    %2 = tpu.matmul %0, %1, %cst {dimension_numbers = #tpu.dot_dimension_numbers<[1], [0], [0], [1], [0, 0, 1, 1], [], []>} : vector<1x10xf32>, vector<10x10xf32>, vector<1x10xf32> -> vector<1x10xf32>
    %c0_3 = arith.constant 0 : index
    %c0_4 = arith.constant 0 : index
    %3 = vector.load %arg2[%c0_3, %c0_4] : memref<1x10xf32, #tpu.memory_space<vmem>>, vector<1x10xf32>
    %4 = arith.addf %2, %3 : vector<1x10xf32>
    %c0_5 = arith.constant 0 : index
    %c0_6 = arith.constant 0 : index
    %5 = vector.load %arg3[%c0_5, %c0_6] : memref<1x10xf32, #tpu.memory_space<vmem>>, vector<1x10xf32>
    %6 = arith.addf %4, %5 : vector<1x10xf32>
    %c0_7 = arith.constant 0 : index
    %c0_8 = arith.constant 0 : index
    %7 = vector.load %arg4[%c0_7, %c0_8] : memref<1x10xf32, #tpu.memory_space<vmem>>, vector<1x10xf32>
    tpu.vector_store %arg4[%c0_7, %c0_8], %6 {strides = array<i32>} : memref<1x10xf32, #tpu.memory_space<vmem>>, vector<1x10xf32>,
    return
  }
}

</mosaic_0001>

<llo_original>
// kernel: tpu_custom_call.1
$region0: #{tpu_custom_call.1}
  #allocation0 [shape = 'u32[]', space=smem, size = 0x4, offset = 0x4, fixed_abs, tag = 'smem constant byte address 0x4 - core index']
  #allocation1 [shape = 'u32[144,128]{1,0:T(1,128)}', space=vmem, size = 0x12000, scoped, tag = 'internal scratch']
  %s0 = inlined_call_operand.hbm [shape: f32[1,10], index: 0, kind: input, shape index: {}]
  %s1 = inlined_call_operand.hbm [shape: f32[10,10], index: 1, kind: input, shape index: {}]
  %s2 = inlined_call_operand.vmem [shape: f32[1,10], index: 2, kind: input, shape index: {}]
  %s3 = inlined_call_operand.vmem [shape: f32[1,10], index: 3, kind: input, shape index: {}]
  %s4 = inlined_call_operand.hbm [shape: f32[1,10], index: 4, kind: output, shape index: {}]
  %s5 = sld [smem:[#allocation0]]
  $region34: #{tpu_custom_call.1} parent=0
    _
  %s7 = ssub.s32 1, %s5
  %s8 = scalar_select 0, %s7, %s5
  $region1: #{tpu_custom_call.1} parent=0
    #allocation2 [shape = 'u8[512]{0}', space=vmem, size = 0x400, scoped, tag = 'input window, operand 0, single buffered']
    #allocation3 [shape = 's32[1]{0}', space=sflag, size = 0x4, scoped, tag = 'scoped memory for tpu_custom_call.1']
    #allocation4 [shape = 's32[1]{0}', space=sflag, size = 0x4, scoped, tag = 'scoped memory for tpu_custom_call.1']
    #allocation5 [shape = 'u8[8192]{0}', space=vmem, size = 0x2000, scoped, tag = 'input window, operand 1, single buffered']
    #allocation6 [shape = 's32[1]{0}', space=sflag, size = 0x4, scoped, tag = 'scoped memory for tpu_custom_call.1']
    #allocation7 [shape = 'u8[512]{0}', space=vmem, size = 0x400, scoped, tag = 'output window, operand 0, single buffered']
    %9 = vsyncpa [#allocation3], 0
    %10 = vsyncpa [#allocation6], 0
    %11 = vsyncpa [#allocation4], 0
    // Predicated region
    $region2: #{tpu_custom_call.1} parent=1 // pred_check
      _
    $region3: #{tpu_custom_call.1} parent=1 // pred_check_branch
      %13 = sbr.rel (0) target = $region5
    $region4: #{tpu_custom_call.1} parent=1 // pred_region
      %s15 = ssub.s32 16, 16
      %16 = vsyncadd [#allocation3], %s15
      %s18 = sshll.u32 [#allocation2], 4
      %s19 = int_to_ptr.vmem [resolvable:$true] %s18
      %21 = dma.hbm_to_vmem [thread:$0]  %s0, 16, %s19, [#allocation3]
    $region5: #{tpu_custom_call.1} parent=1 // pred_fallthru
      _
    // Predicated region
    $region6: #{tpu_custom_call.1} parent=1 // pred_check
      _
    $region7: #{tpu_custom_call.1} parent=1 // pred_check_branch
      %23 = sbr.rel (0) target = $region9
    $region8: #{tpu_custom_call.1} parent=1 // pred_region
      %s25 = ssub.s32 256, 256
      %26 = vsyncadd [#allocation6], %s25
      %s27 = sshll.u32 [#allocation5], 4
      %s28 = int_to_ptr.vmem [resolvable:$true] %s27
      %33 = dma.hbm_to_vmem [thread:$0]  %s1, 256, %s28, [#allocation6], 128, 128, 8
    $region9: #{tpu_custom_call.1} parent=1 // pred_fallthru
      _
    // Predicated region
    $region10: #{tpu_custom_call.1} parent=1 // pred_check
      _
    $region11: #{tpu_custom_call.1} parent=1 // pred_check_branch
      %35 = sbr.rel (0) target = $region13
    $region12: #{tpu_custom_call.1} parent=1 // pred_region
      _
    $region13: #{tpu_custom_call.1} parent=1 // pred_fallthru
      _
    // Predicated region
    $region14: #{tpu_custom_call.1} parent=1 // pred_check
      _
    $region15: #{tpu_custom_call.1} parent=1 // pred_check_branch
      %37 = sbr.rel (0) target = $region17
    $region16: #{tpu_custom_call.1} parent=1 // pred_region
      _
    $region17: #{tpu_custom_call.1} parent=1 // pred_fallthru
      _
    // Predicated region
    $region18: #{tpu_custom_call.1} parent=1 // pred_check
      _
    $region19: #{tpu_custom_call.1} parent=1 // pred_check_branch
      %39 = sbr.rel (0) target = $region21
    $region20: #{tpu_custom_call.1} parent=1 // pred_region
      %40 = dma.done [#allocation3], 16
    $region21: #{tpu_custom_call.1} parent=1 // pred_fallthru
      _
    // Predicated region
    $region22: #{tpu_custom_call.1} parent=1 // pred_check
      _
    $region23: #{tpu_custom_call.1} parent=1 // pred_check_branch
      %42 = sbr.rel (0) target = $region25
    $region24: #{tpu_custom_call.1} parent=1 // pred_region
      %43 = dma.done [#allocation6], 256
    $region25: #{tpu_custom_call.1} parent=1 // pred_fallthru
      _
    %v44 = vld [vmem:[#allocation2] sm:$0x1]
    %v45 = vld [vmem:[#allocation5] sm:$0xff]
    %v46 = vld [vmem:[#allocation5 + $0x8] sm:$0x3]
    %v47 = vld [vmem:[%s2] sm:$0x1]
    %vm48 = vcmask 80896
    %v50 = vsel %vm48, %v44, 0
    %vm52 = vcmask 1041408
    %v54 = vsel %vm52, %v46, 0
    %56 = vmatprep.subr.mxu0 0.0
    %57 = vmatpush1.msra.mxu0 0.0
    %58 = vmatprep.subr.mxu0 0.0
    %59 = vmatpush1.msra.mxu0 0.0
    %60 = vmatprep.subr.mxu0 0.0
    %61 = vmatpush1.msra.mxu0 0.0
    %62 = vmatprep.subr.mxu0 0.0
    %63 = vmatpush1.msra.mxu0 0.0
    %64 = vmatprep.subr.mxu0 0.0
    %65 = vmatpush1.msra.mxu0 0.0
    %66 = vmatprep.subr.mxu0 0.0
    %67 = vmatpush1.msra.mxu0 0.0
    %68 = vmatprep.subr.mxu0 0.0
    %69 = vmatpush1.msra.mxu0 0.0
    %70 = vmatprep.subr.mxu0 0.0
    %71 = vmatpush1.msra.mxu0 0.0
    %72 = vmatprep.subr.mxu0 0.0
    %73 = vmatpush1.msra.mxu0 0.0
    %74 = vmatprep.subr.mxu0 0.0
    %75 = vmatpush1.msra.mxu0 0.0
    %76 = vmatprep.subr.mxu0 0.0
    %77 = vmatpush1.msra.mxu0 0.0
    %78 = vmatprep.subr.mxu0 0.0
    %79 = vmatpush1.msra.mxu0 0.0
    %80 = vmatprep.subr.mxu0 0.0
    %81 = vmatpush1.msra.mxu0 0.0
    %82 = vmatprep.subr.mxu0 0.0
    %83 = vmatpush1.msra.mxu0 0.0
    %84 = vmatprep.subr.mxu0 0.0
    %85 = vmatpush1.msra.mxu0 %v54
    %86 = vmatprep.subr.mxu0 0.0
    %87 = vmatpush1.msra.mxu0 %v45
    %88 = vmatprep.subr.mxu0 0.0
    %89 = vmatpush2.msra.mxu0 0.0
    %90 = vmatprep.subr.mxu0 0.0
    %91 = vmatpush2.msra.mxu0 0.0
    %92 = vmatprep.subr.mxu0 0.0
    %93 = vmatpush2.msra.mxu0 0.0
    %94 = vmatprep.subr.mxu0 0.0
    %95 = vmatpush2.msra.mxu0 0.0
    %96 = vmatprep.subr.mxu0 0.0
    %97 = vmatpush2.msra.mxu0 0.0
    %98 = vmatprep.subr.mxu0 0.0
    %99 = vmatpush2.msra.mxu0 0.0
    %100 = vmatprep.subr.mxu0 0.0
    %101 = vmatpush2.msra.mxu0 0.0
    %102 = vmatprep.subr.mxu0 0.0
    %103 = vmatpush2.msra.mxu0 0.0
    %104 = vmatprep.subr.mxu0 0.0
    %105 = vmatpush2.msra.mxu0 0.0
    %106 = vmatprep.subr.mxu0 0.0
    %107 = vmatpush2.msra.mxu0 0.0
    %108 = vmatprep.subr.mxu0 0.0
    %109 = vmatpush2.msra.mxu0 0.0
    %110 = vmatprep.subr.mxu0 0.0
    %111 = vmatpush2.msra.mxu0 0.0
    %112 = vmatprep.subr.mxu0 0.0
    %113 = vmatpush2.msra.mxu0 0.0
    %114 = vmatprep.subr.mxu0 0.0
    %115 = vmatpush2.msra.mxu0 0.0
    %116 = vmatprep.subr.mxu0 0.0
    %117 = vmatpush2.msra.mxu0 0.0
    %118 = vmatprep.subr.mxu0 0.0
    %119 = vmatpush2.msra.mxu0 0.0
    %120 = vmatprep.mubr.f32.mxu0 0.0
    %121 = vmatmul.mubr.f32.gmra.mxu0 %v50
    %v122 = vpop.f32.mrf.mxu0
    %v123 = vadd.f32 %v47, %v122
    %v124 = vpop.f32.mrf.mxu0
    %125 = vdwg.mxu0
    %v126 = vld [vmem:[%s3] sm:$0x1]
    %v127 = vadd.f32 %v123, %v126
    %vm128 = vcmask 73728
    %129 = vst.msk [vmem:[#allocation7] sm:$0x1] %vm128, %v127
    // Predicated region
    $region26: #{tpu_custom_call.1} parent=1 // pred_check
      _
    $region27: #{tpu_custom_call.1} parent=1 // pred_check_branch
      %131 = sbr.rel (0) target = $region29
    $region28: #{tpu_custom_call.1} parent=1 // pred_region
      %s133 = ssub.s32 16, 16
      %134 = vsyncadd [#allocation4], %s133
      %s136 = sshll.u32 [#allocation7], 4
      %s137 = int_to_ptr.vmem [resolvable:$true] %s136
      %139 = dma.vmem_to_hbm [thread:$0]  %s137, 16, %s4, [#allocation4]
    $region29: #{tpu_custom_call.1} parent=1 // pred_fallthru
      _
    // Predicated region
    $region30: #{tpu_custom_call.1} parent=1 // pred_check
      _
    $region31: #{tpu_custom_call.1} parent=1 // pred_check_branch
      %141 = sbr.rel (0) target = $region33
    $region32: #{tpu_custom_call.1} parent=1 // pred_region
      %142 = dma.done [#allocation4], 16
    $region33: #{tpu_custom_call.1} parent=1 // pred_fallthru
      _
    %143 = vsyncpa [#allocation3], 1
    %144 = vsyncpa [#allocation6], 1
    %145 = vsyncpa [#allocation4], 1

</llo_original>
